<compile_context>
chip_gen: v7x
topology: tpu7x:2x2x1
jax: 0.10.0
libtpu: 0.0.40
codegen_flags: <defaults>
</compile_context>

<pallas_src>
import jax
import jax.numpy as jnp
from jax.experimental import pallas as pl
from jax.experimental.pallas import tpu as pltpu


def _model_kernel(x_ref, w_ref, b_ref, o_ref):
    # x_ref: (M, K)     rows deinterleaved (even rows | odd rows), K zero-padded.
    # w_ref: (K, 2*Hp)  columns permuted+padded [evens, 0.., odds, 0..], *1/6.
    # b_ref: (1, 2*Hp)  same permutation / scale.
    # o_ref: (M//2, Hp)
    x = x_ref[...]
    w = w_ref[...]
    b = b_ref[...]

    # Linear (with 1/6 folded into w, b): single MXU matmul, f32 accumulate.
    l1 = jnp.dot(x, w, preferred_element_type=jnp.float32) + b        # (M, 2*Hp)

    # MaxPool2d(2, 2): both pooling axes are contiguous-half maxes thanks to
    # the host-side column permutation and row deinterleave.
    hp = l1.shape[1] // 2
    colmax = jnp.maximum(l1[:, :hp], l1[:, hp:])                      # (M, Hp)
    m = colmax.shape[0] // 2
    mx = jnp.maximum(colmax[:m, :], colmax[m:, :])                    # (M//2, Hp)

    # clamp(0, 6) / 6  ==  clamp(scaled, 0, 1) since 1/6 is already applied.
    o_ref[...] = jnp.clip(mx, 0.0, 1.0).astype(o_ref.dtype)


def model_forward(x, weight, bias):
    """x: (B, C, H, Cin) f32.  weight: (Cout, Cin) torch layout.  bias: (Cout,)."""
    B, C, H, Cin = x.shape
    Cout = weight.shape[0]
    # Flattened row-pair pooling is only valid if H and Cout are even.
    assert H % 2 == 0 and Cout % 2 == 0

    half = Cout // 2                         # 5 real pooled columns
    half_pad = ((half + 7) // 8) * 8         # lane-pad each half -> 8
    k_pad = ((Cin + 127) // 128) * 128       # contraction pad 100 -> 128
    M = B * C * H                            # 128 rows at the toy shapes

    inv6 = jnp.float32(1.0 / 6.0)
    wt = (weight.T * inv6).astype(x.dtype)                        # (Cin, Cout)
    # Column permutation [evens | odds], each half zero-padded to half_pad lanes.
    w_p = jnp.zeros((k_pad, 2 * half_pad), dtype=x.dtype)
    w_p = w_p.at[:Cin, :half].set(wt[:, 0::2])
    w_p = w_p.at[:Cin, half_pad:half_pad + half].set(wt[:, 1::2])
    b_p = jnp.zeros((1, 2 * half_pad), dtype=x.dtype)
    b_p = b_p.at[0, :half].set((bias[0::2] * inv6).astype(x.dtype))
    b_p = b_p.at[0, half_pad:half_pad + half].set((bias[1::2] * inv6).astype(x.dtype))

    # Flatten, zero-pad Cin, and deinterleave row pairs (evens then odds) so the
    # in-kernel row pool is a contiguous, sublane-aligned split at M//2.
    xf = x.reshape(M, Cin)
    xf = jnp.pad(xf, ((0, 0), (0, k_pad - Cin)))
    xf = xf.reshape(M // 2, 2, k_pad).transpose(1, 0, 2).reshape(M, k_pad)

    out = pl.pallas_call(
        _model_kernel,
        out_shape=jax.ShapeDtypeStruct((M // 2, half_pad), x.dtype),
        in_specs=[
            pl.BlockSpec(memory_space=pltpu.MemorySpace.VMEM),
            pl.BlockSpec(memory_space=pltpu.MemorySpace.VMEM),
            pl.BlockSpec(memory_space=pltpu.MemorySpace.VMEM),
        ],
        out_specs=pl.BlockSpec(memory_space=pltpu.MemorySpace.VMEM),
    )(xf, w_p, b_p)
    return out[:, :half].reshape(B, C, H // 2, half)


def _reference(x, weight, bias):
    B, C, H, Cin = x.shape
    Cout = weight.shape[0]
    l1 = jnp.einsum("bchi,oi->bcho", x, weight) + bias                 # Linear
    mx = l1.reshape(B, C, H // 2, 2, Cout // 2, 2).max(axis=(3, 5))    # MaxPool2d(2,2)
    return jnp.clip(mx, 0.0, 6.0) / 6.0


if __name__ == "__main__":
    key = jax.random.PRNGKey(0)
    kx, kw, kb = jax.random.split(key, 3)

    # Small shapes consistent with the module: Linear(100, 10) acts on the
    # trailing dim, so the input's last dim must be 100.
    B, C, H, Cin, Cout = 2, 4, 16, 100, 10

    x = jax.random.normal(kx, (B, C, H, Cin), dtype=jnp.float32)
    # Deterministic nn.Linear-style init: U(-1/sqrt(Cin), 1/sqrt(Cin))
    bound = 1.0 / jnp.sqrt(jnp.float32(Cin))
    weight = jax.random.uniform(kw, (Cout, Cin), jnp.float32, -bound, bound)
    bias = jax.random.uniform(kb, (Cout,), jnp.float32, -bound, bound)

    out = jax.block_until_ready(model_forward(x, weight, bias))
    ref = _reference(x, weight, bias)
    assert out.shape == (B, C, H // 2, Cout // 2), out.shape
    assert jnp.allclose(out, ref, atol=1e-5, rtol=1e-5)
    print("KERNEL_OK")
</pallas_src>

<mosaic_0001>
module attributes {stable_mosaic.version = 11 : i64} {
  func.func @_model_kernel(%arg0: memref<128x128xf32, #tpu.memory_space<vmem>>, %arg1: memref<128x16xf32, #tpu.memory_space<vmem>>, %arg2: memref<1x16xf32, #tpu.memory_space<vmem>>, %arg3: memref<64x8xf32, #tpu.memory_space<vmem>>) attributes {dimension_semantics = [], scalar_prefetch = 0 : i64, scratch_operands = 0 : i64, tpu.core_type = #tpu.core_type<tc>} {
    %c0 = arith.constant 0 : index
    %c0_0 = arith.constant 0 : index
    %0 = vector.load %arg0[%c0, %c0_0] : memref<128x128xf32, #tpu.memory_space<vmem>>, vector<128x128xf32>
    %c0_1 = arith.constant 0 : index
    %c0_2 = arith.constant 0 : index
    %1 = vector.load %arg1[%c0_1, %c0_2] : memref<128x16xf32, #tpu.memory_space<vmem>>, vector<128x16xf32>
    %c0_3 = arith.constant 0 : index
    %c0_4 = arith.constant 0 : index
    %2 = vector.load %arg2[%c0_3, %c0_4] : memref<1x16xf32, #tpu.memory_space<vmem>>, vector<1x16xf32>
    %cst = arith.constant dense<0.000000e+00> : vector<128x16xf32>
    %3 = tpu.matmul %0, %1, %cst {dimension_numbers = #tpu.dot_dimension_numbers<[1], [0], [0], [1], [0, 0, 1, 1], [], []>} : vector<128x128xf32>, vector<128x16xf32>, vector<128x16xf32> -> vector<128x16xf32>
    %4 = vector.broadcast %2 : vector<1x16xf32> to vector<128x16xf32>
    %5 = arith.addf %3, %4 : vector<128x16xf32>
    %6 = vector.extract_strided_slice %5 {offsets = [0, 0], sizes = [128, 8], strides = [1, 1]} : vector<128x16xf32> to vector<128x8xf32>
    %7 = vector.extract_strided_slice %5 {offsets = [0, 8], sizes = [128, 8], strides = [1, 1]} : vector<128x16xf32> to vector<128x8xf32>
    %8 = arith.maximumf %6, %7 : vector<128x8xf32>
    %9 = vector.extract_strided_slice %8 {offsets = [0, 0], sizes = [64, 8], strides = [1, 1]} : vector<128x8xf32> to vector<64x8xf32>
    %10 = vector.extract_strided_slice %8 {offsets = [64, 0], sizes = [64, 8], strides = [1, 1]} : vector<128x8xf32> to vector<64x8xf32>
    %11 = arith.maximumf %9, %10 : vector<64x8xf32>
    %cst_5 = arith.constant 0.000000e+00 : f32
    %cst_6 = arith.constant 1.000000e+00 : f32
    %12 = vector.broadcast %cst_5 : f32 to vector<64x8xf32>
    %13 = arith.maximumf %12, %11 : vector<64x8xf32>
    %14 = vector.broadcast %cst_6 : f32 to vector<64x8xf32>
    %15 = arith.minimumf %14, %13 : vector<64x8xf32>
    %c0_7 = arith.constant 0 : index
    %c0_8 = arith.constant 0 : index
    %16 = vector.load %arg3[%c0_7, %c0_8] : memref<64x8xf32, #tpu.memory_space<vmem>>, vector<64x8xf32>
    tpu.vector_store %arg3[%c0_7, %c0_8], %15 {strides = array<i32>} : memref<64x8xf32, #tpu.memory_space<vmem>>, vector<64x8xf32>,
    return
  }
}

</mosaic_0001>

<llo_original>
// kernel: tpu_custom_call.1
$region0: #{tpu_custom_call.1}
  #allocation0 [shape = 'u32[]', space=smem, size = 0x4, offset = 0x4, fixed_abs, tag = 'smem constant byte address 0x4 - core index']
  #allocation1 [shape = 'u32[144,128]{1,0:T(1,128)}', space=vmem, size = 0x12000, scoped, tag = 'internal scratch']
  %s0 = inlined_call_operand.vmem [shape: f32[128,128], index: 0, kind: input, shape index: {}]
  %s1 = inlined_call_operand.vmem [shape: f32[128,16], index: 1, kind: input, shape index: {}]
  %s2 = inlined_call_operand.vmem [shape: f32[1,16], index: 2, kind: input, shape index: {}]
  %s3 = inlined_call_operand.vmem [shape: f32[64,8], index: 3, kind: output, shape index: {}]
  %s4 = sld [smem:[#allocation0]]
  $region22: #{tpu_custom_call.1} parent=0
    _
  %s6 = ssub.s32 1, %s4
  %s7 = scalar_select 0, %s6, %s4
  // Predicated region
  $region2: #{tpu_custom_call.1} parent=0 // pred_check
    _
  $region3: #{tpu_custom_call.1} parent=0 // pred_check_branch
    %9 = sbr.rel (0) target = $region5
  $region4: #{tpu_custom_call.1} parent=0 // pred_region
    _
  $region5: #{tpu_custom_call.1} parent=0 // pred_fallthru
    _
  // Predicated region
  $region6: #{tpu_custom_call.1} parent=0 // pred_check
    _
  $region7: #{tpu_custom_call.1} parent=0 // pred_check_branch
    %11 = sbr.rel (0) target = $region9
  $region8: #{tpu_custom_call.1} parent=0 // pred_region
    _
  $region9: #{tpu_custom_call.1} parent=0 // pred_fallthru
    _
  // Predicated region
  $region10: #{tpu_custom_call.1} parent=0 // pred_check
    _
  $region11: #{tpu_custom_call.1} parent=0 // pred_check_branch
    %13 = sbr.rel (0) target = $region13
  $region12: #{tpu_custom_call.1} parent=0 // pred_region
    _
  $region13: #{tpu_custom_call.1} parent=0 // pred_fallthru
    _
  %v14 = vld [vmem:[%s0] sm:$0xff]
  %v15 = vld [vmem:[%s0 + $0x8] sm:$0xff]
  %v16 = vld [vmem:[%s0 + $0x10] sm:$0xff]
  %v17 = vld [vmem:[%s0 + $0x18] sm:$0xff]
  %v18 = vld [vmem:[%s0 + $0x20] sm:$0xff]
  %v19 = vld [vmem:[%s0 + $0x28] sm:$0xff]
  %v20 = vld [vmem:[%s0 + $0x30] sm:$0xff]
  %v21 = vld [vmem:[%s0 + $0x38] sm:$0xff]
  %v22 = vld [vmem:[%s0 + $0x40] sm:$0xff]
  %v23 = vld [vmem:[%s0 + $0x48] sm:$0xff]
  %v24 = vld [vmem:[%s0 + $0x50] sm:$0xff]
  %v25 = vld [vmem:[%s0 + $0x58] sm:$0xff]
  %v26 = vld [vmem:[%s0 + $0x60] sm:$0xff]
  %v27 = vld [vmem:[%s0 + $0x68] sm:$0xff]
  %v28 = vld [vmem:[%s0 + $0x70] sm:$0xff]
  %v29 = vld [vmem:[%s0 + $0x78] sm:$0xff]
  %v30 = vld [vmem:[%s1] sm:$0xff]
  %v31 = vld [vmem:[%s1 + $0x8] sm:$0xff]
  %v32 = vld [vmem:[%s1 + $0x10] sm:$0xff]
  %v33 = vld [vmem:[%s1 + $0x18] sm:$0xff]
  %v34 = vld [vmem:[%s1 + $0x20] sm:$0xff]
  %v35 = vld [vmem:[%s1 + $0x28] sm:$0xff]
  %v36 = vld [vmem:[%s1 + $0x30] sm:$0xff]
  %v37 = vld [vmem:[%s1 + $0x38] sm:$0xff]
  %v38 = vld [vmem:[%s1 + $0x40] sm:$0xff]
  %v39 = vld [vmem:[%s1 + $0x48] sm:$0xff]
  %v40 = vld [vmem:[%s1 + $0x50] sm:$0xff]
  %v41 = vld [vmem:[%s1 + $0x58] sm:$0xff]
  %v42 = vld [vmem:[%s1 + $0x60] sm:$0xff]
  %v43 = vld [vmem:[%s1 + $0x68] sm:$0xff]
  %v44 = vld [vmem:[%s1 + $0x70] sm:$0xff]
  %v45 = vld [vmem:[%s1 + $0x78] sm:$0xff]
  %v46 = vld [vmem:[%s2] sm:$0x1]
  %v48 = vlaneseq
  %v49 = vshrl.u32 %v48, 7
  %v50 = vsub.s32 0, %v49
  %v51 = vrot.slane %v46, %v50
  %53 = vmatprep.subr.mxu0 0.0
  %54 = vmatpush1.msra.mxu0 %v30
  %55 = vmatprep.subr.mxu0 0.0
  %56 = vmatpush1.msra.mxu0 %v31
  %57 = vmatprep.subr.mxu0 0.0
  %58 = vmatpush1.msra.mxu0 %v32
  %59 = vmatprep.subr.mxu0 0.0
  %60 = vmatpush1.msra.mxu0 %v33
  %61 = vmatprep.subr.mxu0 0.0
  %62 = vmatpush1.msra.mxu0 %v34
  %63 = vmatprep.subr.mxu0 0.0
  %64 = vmatpush1.msra.mxu0 %v35
  %65 = vmatprep.subr.mxu0 0.0
  %66 = vmatpush1.msra.mxu0 %v36
  %67 = vmatprep.subr.mxu0 0.0
  %68 = vmatpush1.msra.mxu0 %v37
  %69 = vmatprep.subr.mxu0 0.0
  %70 = vmatpush1.msra.mxu0 %v38
  %71 = vmatprep.subr.mxu0 0.0
  %72 = vmatpush1.msra.mxu0 %v39
  %73 = vmatprep.subr.mxu0 0.0
  %74 = vmatpush1.msra.mxu0 %v40
  %75 = vmatprep.subr.mxu0 0.0
  %76 = vmatpush1.msra.mxu0 %v41
  %77 = vmatprep.subr.mxu0 0.0
  %78 = vmatpush1.msra.mxu0 %v42
  %79 = vmatprep.subr.mxu0 0.0
  %80 = vmatpush1.msra.mxu0 %v43
  %81 = vmatprep.subr.mxu0 0.0
  %82 = vmatpush1.msra.mxu0 %v44
  %83 = vmatprep.subr.mxu0 0.0
  %84 = vmatpush1.msra.mxu0 %v45
  %85 = vmatprep.subr.mxu0 0.0
  %86 = vmatpush1.msra.mxu0 0.0
  %87 = vmatprep.subr.mxu0 0.0
  %88 = vmatpush1.msra.mxu0 0.0
  %89 = vmatprep.subr.mxu0 0.0
  %90 = vmatpush1.msra.mxu0 0.0
  %91 = vmatprep.subr.mxu0 0.0
  %92 = vmatpush1.msra.mxu0 0.0
  %93 = vmatprep.subr.mxu0 0.0
  %94 = vmatpush1.msra.mxu0 0.0
  %95 = vmatprep.subr.mxu0 0.0
  %96 = vmatpush1.msra.mxu0 0.0
  %97 = vmatprep.subr.mxu0 0.0
  %98 = vmatpush1.msra.mxu0 0.0
  %99 = vmatprep.subr.mxu0 0.0
  %100 = vmatpush1.msra.mxu0 0.0
  %101 = vmatprep.subr.mxu0 0.0
  %102 = vmatpush1.msra.mxu0 0.0
  %103 = vmatprep.subr.mxu0 0.0
  %104 = vmatpush1.msra.mxu0 0.0
  %105 = vmatprep.subr.mxu0 0.0
  %106 = vmatpush1.msra.mxu0 0.0
  %107 = vmatprep.subr.mxu0 0.0
  %108 = vmatpush1.msra.mxu0 0.0
  %109 = vmatprep.subr.mxu0 0.0
  %110 = vmatpush1.msra.mxu0 0.0
  %111 = vmatprep.subr.mxu0 0.0
  %112 = vmatpush1.msra.mxu0 0.0
  %113 = vmatprep.subr.mxu0 0.0
  %114 = vmatpush1.msra.mxu0 0.0
  %115 = vmatprep.subr.mxu0 0.0
  %116 = vmatpush1.msra.mxu0 0.0
  %117 = vmatprep.mubr.f32.mxu0 0.0
  %118 = vmatmul.mubr.f32.gmra.mrb[0].mxu0 %v14
  %v119 = vpop.f32.mrb[0].mxu0
  %v120 = vadd.f32 %v51, %v119
  %v121 = vpop.f32.mrb[0].mxu0
  %122 = vmatprep.mubr.f32.mxu0 0.0
  %123 = vmatmul.mubr.f32.gmra.mrb[0].mxu0 %v15
  %v124 = vpop.f32.mrb[0].mxu0
  %v125 = vadd.f32 %v51, %v124
  %v126 = vpop.f32.mrb[0].mxu0
  %127 = vmatprep.mubr.f32.mxu0 0.0
  %128 = vmatmul.mubr.f32.gmra.mrb[0].mxu0 %v16
  %v129 = vpop.f32.mrb[0].mxu0
  %v130 = vadd.f32 %v51, %v129
  %v131 = vpop.f32.mrb[0].mxu0
  %132 = vmatprep.mubr.f32.mxu0 0.0
  %133 = vmatmul.mubr.f32.gmra.mrb[0].mxu0 %v17
  %v134 = vpop.f32.mrb[0].mxu0
  %v135 = vadd.f32 %v51, %v134
  %v136 = vpop.f32.mrb[0].mxu0
  %137 = vmatprep.mubr.f32.mxu0 0.0
  %138 = vmatmul.mubr.f32.gmra.mrb[0].mxu0 %v18
  %v139 = vpop.f32.mrb[0].mxu0
  %v140 = vadd.f32 %v51, %v139
  %v141 = vpop.f32.mrb[0].mxu0
  %142 = vmatprep.mubr.f32.mxu0 0.0
  %143 = vmatmul.mubr.f32.gmra.mrb[0].mxu0 %v19
  %v144 = vpop.f32.mrb[0].mxu0
  %v145 = vadd.f32 %v51, %v144
  %v146 = vpop.f32.mrb[0].mxu0
  %147 = vmatprep.mubr.f32.mxu0 0.0
  %148 = vmatmul.mubr.f32.gmra.mrb[0].mxu0 %v20
  %v149 = vpop.f32.mrb[0].mxu0
  %v150 = vadd.f32 %v51, %v149
  %v151 = vpop.f32.mrb[0].mxu0
  %152 = vmatprep.mubr.f32.mxu0 0.0
  %153 = vmatmul.mubr.f32.gmra.mrb[0].mxu0 %v21
  %v154 = vpop.f32.mrb[0].mxu0
  %v155 = vadd.f32 %v51, %v154
  %v156 = vpop.f32.mrb[0].mxu0
  %157 = vmatprep.mubr.f32.mxu0 0.0
  %158 = vmatmul.mubr.f32.gmra.mrb[0].mxu0 %v22
  %v159 = vpop.f32.mrb[0].mxu0
  %v160 = vadd.f32 %v51, %v159
  %v161 = vpop.f32.mrb[0].mxu0
  %162 = vmatprep.mubr.f32.mxu0 0.0
  %163 = vmatmul.mubr.f32.gmra.mrb[0].mxu0 %v23
  %v164 = vpop.f32.mrb[0].mxu0
  %v165 = vadd.f32 %v51, %v164
  %v166 = vpop.f32.mrb[0].mxu0
  %167 = vmatprep.mubr.f32.mxu0 0.0
  %168 = vmatmul.mubr.f32.gmra.mrb[0].mxu0 %v24
  %v169 = vpop.f32.mrb[0].mxu0
  %v170 = vadd.f32 %v51, %v169
  %v171 = vpop.f32.mrb[0].mxu0
  %172 = vmatprep.mubr.f32.mxu0 0.0
  %173 = vmatmul.mubr.f32.gmra.mrb[0].mxu0 %v25
  %v174 = vpop.f32.mrb[0].mxu0
  %v175 = vadd.f32 %v51, %v174
  %v176 = vpop.f32.mrb[0].mxu0
  %177 = vmatprep.mubr.f32.mxu0 0.0
  %178 = vmatmul.mubr.f32.gmra.mrb[0].mxu0 %v26
  %v179 = vpop.f32.mrb[0].mxu0
  %v180 = vadd.f32 %v51, %v179
  %v181 = vpop.f32.mrb[0].mxu0
  %182 = vmatprep.mubr.f32.mxu0 0.0
  %183 = vmatmul.mubr.f32.gmra.mrb[0].mxu0 %v27
  %v184 = vpop.f32.mrb[0].mxu0
  %v185 = vadd.f32 %v51, %v184
  %v186 = vpop.f32.mrb[0].mxu0
  %187 = vmatprep.mubr.f32.mxu0 0.0
  %188 = vmatmul.mubr.f32.gmra.mrb[0].mxu0 %v28
  %v189 = vpop.f32.mrb[0].mxu0
  %v190 = vadd.f32 %v51, %v189
  %v191 = vpop.f32.mrb[0].mxu0
  %192 = vmatprep.mubr.f32.mxu0 0.0
  %193 = vmatmul.mubr.f32.gmra.mrb[0].mxu0 %v29
  %v194 = vpop.f32.mrb[0].mxu0
  %v195 = vadd.f32 %v51, %v194
  %v196 = vpop.f32.mrb[0].mxu0
  %197 = vdwg.mxu0
  %214 = vrot.lane.b32.xlu0 %v120, 120
  %v215 = vpop.permute.xlu0 %214
  %216 = vrot.lane.b32.xlu0 %v125, 120
  %v217 = vpop.permute.xlu0 %216
  %218 = vrot.lane.b32.xlu0 %v130, 120
  %v219 = vpop.permute.xlu0 %218
  %220 = vrot.lane.b32.xlu0 %v135, 120
  %v221 = vpop.permute.xlu0 %220
  %222 = vrot.lane.b32.xlu0 %v140, 120
  %v223 = vpop.permute.xlu0 %222
  %224 = vrot.lane.b32.xlu0 %v145, 120
  %v225 = vpop.permute.xlu0 %224
  %226 = vrot.lane.b32.xlu0 %v150, 120
  %v227 = vpop.permute.xlu0 %226
  %228 = vrot.lane.b32.xlu0 %v155, 120
  %v229 = vpop.permute.xlu0 %228
  %230 = vrot.lane.b32.xlu0 %v160, 120
  %v231 = vpop.permute.xlu0 %230
  %232 = vrot.lane.b32.xlu0 %v165, 120
  %v233 = vpop.permute.xlu0 %232
  %234 = vrot.lane.b32.xlu0 %v170, 120
  %v235 = vpop.permute.xlu0 %234
  %236 = vrot.lane.b32.xlu0 %v175, 120
  %v237 = vpop.permute.xlu0 %236
  %238 = vrot.lane.b32.xlu0 %v180, 120
  %v239 = vpop.permute.xlu0 %238
  %240 = vrot.lane.b32.xlu0 %v185, 120
  %v241 = vpop.permute.xlu0 %240
  %242 = vrot.lane.b32.xlu0 %v190, 120
  %v243 = vpop.permute.xlu0 %242
  %244 = vrot.lane.b32.xlu0 %v195, 120
  %v245 = vpop.permute.xlu0 %244
  %v262 = vmax.f32 %v120, %v215
  %v263 = vmax.f32 %v125, %v217
  %v264 = vmax.f32 %v130, %v219
  %v265 = vmax.f32 %v135, %v221
  %v266 = vmax.f32 %v140, %v223
  %v267 = vmax.f32 %v145, %v225
  %v268 = vmax.f32 %v150, %v227
  %v269 = vmax.f32 %v155, %v229
  %v270 = vmax.f32 %v160, %v231
  %v271 = vmax.f32 %v165, %v233
  %v272 = vmax.f32 %v170, %v235
  %v273 = vmax.f32 %v175, %v237
  %v274 = vmax.f32 %v180, %v239
  %v275 = vmax.f32 %v185, %v241
  %v276 = vmax.f32 %v190, %v243
  %v277 = vmax.f32 %v195, %v245
  %v278 = vmax.f32 %v262, %v270
  %v279 = vmax.f32 %v263, %v271
  %v280 = vmax.f32 %v264, %v272
  %v281 = vmax.f32 %v265, %v273
  %v282 = vmax.f32 %v266, %v274
  %v283 = vmax.f32 %v267, %v275
  %v284 = vmax.f32 %v268, %v276
  %v285 = vmax.f32 %v269, %v277
  %v286 = vmax.f32 %v278, 0.0
  %v287 = vmax.f32 %v279, 0.0
  %v288 = vmax.f32 %v280, 0.0
  %v289 = vmax.f32 %v281, 0.0
  %v290 = vmax.f32 %v282, 0.0
  %v291 = vmax.f32 %v283, 0.0
  %v292 = vmax.f32 %v284, 0.0
  %v293 = vmax.f32 %v285, 0.0
  %v294 = vmin.f32 %v286, 1.0
  %v295 = vmin.f32 %v287, 1.0
  %v296 = vmin.f32 %v288, 1.0
  %v297 = vmin.f32 %v289, 1.0
  %v298 = vmin.f32 %v290, 1.0
  %v299 = vmin.f32 %v291, 1.0
  %v300 = vmin.f32 %v292, 1.0
  %v301 = vmin.f32 %v293, 1.0
  %vm302 = vcmask 64512
  %303 = vst.msk [vmem:[%s3] sm:$0xff] %vm302, %v294
  %304 = vst.msk [vmem:[%s3 + $0x8] sm:$0xff] %vm302, %v295
  %305 = vst.msk [vmem:[%s3 + $0x10] sm:$0xff] %vm302, %v296
  %306 = vst.msk [vmem:[%s3 + $0x18] sm:$0xff] %vm302, %v297
  %307 = vst.msk [vmem:[%s3 + $0x20] sm:$0xff] %vm302, %v298
  %308 = vst.msk [vmem:[%s3 + $0x28] sm:$0xff] %vm302, %v299
  %309 = vst.msk [vmem:[%s3 + $0x30] sm:$0xff] %vm302, %v300
  %310 = vst.msk [vmem:[%s3 + $0x38] sm:$0xff] %vm302, %v301
  // Predicated region
  $region14: #{tpu_custom_call.1} parent=0 // pred_check
    _
  $region15: #{tpu_custom_call.1} parent=0 // pred_check_branch
    %312 = sbr.rel (0) target = $region17
  $region16: #{tpu_custom_call.1} parent=0 // pred_region
    _
  $region17: #{tpu_custom_call.1} parent=0 // pred_fallthru
    _
  // Predicated region
  $region18: #{tpu_custom_call.1} parent=0 // pred_check
    _
  $region19: #{tpu_custom_call.1} parent=0 // pred_check_branch
    %314 = sbr.rel (0) target = $region21
  $region20: #{tpu_custom_call.1} parent=0 // pred_region
    _
  $region21: #{tpu_custom_call.1} parent=0 // pred_fallthru
    _

</llo_original>
